<compile_context>
chip_gen: v5e
topology: v5e:2x2
jax: 0.10.0
libtpu: 0.0.40
codegen_flags: <defaults>
</compile_context>

<pallas_src>
import functools
import math

import jax
import jax.numpy as jnp
import numpy as np
from jax import lax
from jax.experimental import pallas as pl
from jax.experimental.pallas import tpu as pltpu


def _spatial_attention_kernel(xall_ref, w1_ref, w2_ref, pv_ref, sel1_ref,
                              sel2_ref, o_ref, *, C, C1, H, W, dx, NB):
    """One grid step = NB images, fully fused conv/bn/pool/prelu x2 + residual."""
    f32 = jnp.float32
    Wp = W + 2                      # padded row stride of the input image
    Npix = H * Wp                   # flat slab length per image (incl. row seams)
    Ho1, Wo1 = H // 4, W // 4       # spatial extent after conv1(stride2) + pool1
    Wp2 = Wo1 + 2                   # padded row stride, stage 2
    Np1 = (Ho1 + 2) * Wp2           # flat padded stage-2 image length
    Ho2, Wo2 = Ho1 // 2, Wo1 // 2   # final spatial extent
    nout = Ho2 * Wo2

    # Packed small params: [b1 (C1) | b2 (C) | alpha1 | alpha2].
    pv = pv_ref[...]
    b1 = pv[0:C1]                   # (C1, 1)
    b2 = pv[C1:C1 + C]              # (C, 1)
    a1 = pv[C1 + C, 0]
    a2 = pv[C1 + C + 1, 0]

    xall = xall_ref[0]              # (3C, NB*Npix): 3 kh-shifted slabs, batch on lanes

    # ---- stage 1: conv1(3x3, s2, p1) + BN1 (folded into w1/b1) --------------
    # 3x3 conv collapses to 3 accumulating matmuls over kw-shifted lane slices.
    Wy1 = NB * Npix - 2
    y1 = b1
    for kw in range(3):
        y1 = y1 + jnp.dot(w1_ref[kw], xall[:, kw:kw + Wy1],
                          preferred_element_type=f32)           # (C1, Wy1)

    # Fused stride-2 decimation + 2x2 max-pool: VPU max of 4 shifted slices,
    # then ONE constant 0/1 matmul (sel1) that also scatters straight into the
    # zero-padded stage-2 layout (pad columns of sel1 are all-zero).
    L1 = Wy1 - (2 * Wp + 2)
    m1 = y1[:, :L1]
    for d in (2, 2 * Wp, 2 * Wp + 2):
        m1 = jnp.maximum(m1, y1[:, d:d + L1])
    p1 = jnp.dot(m1, sel1_ref[...], preferred_element_type=f32)  # (C1, NB*Np1)
    p1 = jnp.where(p1 > 0, p1, a1 * p1)                          # PReLU; keeps pad = 0

    # ---- stage 2: conv2(3x3, s1, p1) + BN2 (folded into w2/b2) --------------
    Wy2 = NB * Np1 - (2 * Wp2 + 2)
    y2 = b2
    for kh in range(3):
        for kw in range(3):
            s = kh * Wp2 + kw
            y2 = y2 + jnp.dot(w2_ref[kh * 3 + kw], p1[:, s:s + Wy2],
                              preferred_element_type=f32)        # (C, Wy2)

    # 2x2 max-pool fused the same way.
    L2 = Wy2 - (Wp2 + 1)
    m2 = y2[:, :L2]
    for d in (1, Wp2, Wp2 + 1):
        m2 = jnp.maximum(m2, y2[:, d:d + L2])
    p2 = jnp.dot(m2, sel2_ref[...], preferred_element_type=f32)  # (C, NB*nout)
    p2 = jnp.where(p2 > 0, p2, a2 * p2)                          # PReLU

    # ---- identity * out + identity -------------------------------------------
    cidx = (dx + 1) * Wp + (dx + 1)   # flat padded index of x[:, dx, dx] (kh=0 slab)
    for b in range(NB):
        ident = xall[0:C, b * Npix + cidx:b * Npix + cidx + 1]   # (C, 1)
        o_ref[b] = ident * (p2[:, b * nout:(b + 1) * nout] + 1.0)


def _images_per_step(batch):
    """NB=1 on multi-TensorCore chips (v7x / v4 megacore) so the 'parallel' batch
    grid axis splits across cores; NB=batch on single-TC chips (v5e/v6e) so the
    whole batch is one grid step (less per-step overhead, wider matmul N)."""
    try:
        kind = jax.devices()[0].device_kind.lower()
    except Exception:
        kind = ""
    multi_tc = ("v7" in kind) or ("7x" in kind) or ("v4" in kind)
    return 1 if multi_tc else batch


def _build_selection_matrices(NB, H, W):
    """Constant 0/1 decimation matrices (built once in the wrapper, not per step)."""
    Wp = W + 2
    Npix = H * Wp
    Ho1, Wo1 = H // 4, W // 4
    Wp2 = Wo1 + 2
    Np1 = (Ho1 + 2) * Wp2
    Ho2, Wo2 = Ho1 // 2, Wo1 // 2

    # sel1: pick column 4*Wp*i + 4*j of the (max'ed) stride-1 conv1 output and
    # place it at padded stage-2 position (i+1, j+1); pad columns stay zero.
    L1 = NB * Npix - 2 - (2 * Wp + 2)
    sel1 = np.zeros((L1, NB * Np1), np.float32)
    for b in range(NB):
        for i in range(Ho1):
            for j in range(Wo1):
                sel1[b * Npix + 4 * Wp * i + 4 * j,
                     b * Np1 + (i + 1) * Wp2 + (j + 1)] = 1.0

    # sel2: pick column 2*Wp2*i + 2*j of the conv2 output -> final (i, j).
    L2 = NB * Np1 - (2 * Wp2 + 2) - (Wp2 + 1)
    sel2 = np.zeros((L2, NB * Ho2 * Wo2), np.float32)
    for b in range(NB):
        for i in range(Ho2):
            for j in range(Wo2):
                sel2[b * Np1 + 2 * Wp2 * i + 2 * j,
                     b * (Ho2 * Wo2) + i * Wo2 + j] = 1.0
    return jnp.asarray(sel1), jnp.asarray(sel2)


def _build_slab_input(x, NB):
    """(B, C, H, W) -> (B//NB, 3C, NB*H*(W+2)): zero-pad, flatten, and stack the 3
    kh-shifted slabs of the padded image (wrapper-side layout plumbing, free)."""
    B, C, H, W = x.shape
    Wp = W + 2
    Npix = H * Wp
    xpad = jnp.pad(x, ((0, 0), (0, 0), (1, 1), (1, 1)))
    xflat = xpad.reshape(B, C, (H + 2) * Wp)
    slabs = jnp.stack([xflat[:, :, kh * Wp:kh * Wp + Npix] for kh in range(3)],
                      axis=1)                                    # (B, 3, C, Npix)
    xa = slabs.reshape(B, 3 * C, Npix)
    xa = (xa.reshape(B // NB, NB, 3 * C, Npix)
            .transpose(0, 2, 1, 3)
            .reshape(B // NB, 3 * C, NB * Npix))
    return xa


def spatial_attention_forward(x, params, patch_size, images_per_step=None):
    B, C, H, W = x.shape
    assert H % 8 == 0 and W % 8 == 0, "fused stride-2 + pool indexing needs H, W % 8 == 0"
    C1 = 2 * C
    dx = patch_size // 2
    Ho2, Wo2 = H // 8, W // 8
    nout = Ho2 * Wo2
    Npix = H * (W + 2)

    NB = images_per_step if images_per_step is not None else _images_per_step(B)
    assert B % NB == 0, (B, NB)

    # Fold eval-mode BN affine into the conv weights / biases (wrapper-side glue).
    w1eff = params['w1'] * params['scale1'][:, None, None, None]
    b1eff = params['b1'] * params['scale1'] + params['shift1']
    w2eff = params['w2'] * params['scale2'][:, None, None, None]
    b2eff = params['b2'] * params['scale2'] + params['shift2']

    # conv1 weights grouped by kw: W_kw[co, kh*C + ci] = w1eff[co, ci, kh, kw]
    w1kw = jnp.transpose(w1eff, (3, 0, 2, 1)).reshape(3, C1, 3 * C)
    # conv2 weights per tap:      W2_{kh*3+kw}[co, ci] = w2eff[co, ci, kh, kw]
    w2k = jnp.transpose(w2eff, (2, 3, 0, 1)).reshape(9, C, C1)
    # Packed small params: [b1 | b2 | alpha1 | alpha2].
    pv = jnp.concatenate([b1eff, b2eff,
                          params['a1'].reshape(-1),
                          params['a2'].reshape(-1)]).reshape(-1, 1)

    sel1, sel2 = _build_selection_matrices(NB, H, W)
    xall = _build_slab_input(x, NB)

    kernel = functools.partial(_spatial_attention_kernel,
                               C=C, C1=C1, H=H, W=W, dx=dx, NB=NB)
    const2 = lambda g: (0, 0)
    const3 = lambda g: (0, 0, 0)
    out = pl.pallas_call(
        kernel,
        out_shape=jax.ShapeDtypeStruct((B, C, nout), jnp.float32),
        grid=(B // NB,),
        in_specs=[
            pl.BlockSpec((1, 3 * C, NB * Npix), lambda g: (g, 0, 0)),  # slab input
            pl.BlockSpec(w1kw.shape, const3),                          # conv1 weights (by kw)
            pl.BlockSpec(w2k.shape, const3),                           # conv2 weights (by tap)
            pl.BlockSpec(pv.shape, const2),                            # b1|b2|a1|a2
            pl.BlockSpec(sel1.shape, const2),                          # pool1 selection (padded layout)
            pl.BlockSpec(sel2.shape, const2),                          # pool2 selection
        ],
        out_specs=pl.BlockSpec((NB, C, nout), lambda g: (g, 0, 0)),
        compiler_params=pltpu.CompilerParams(
            dimension_semantics=("parallel",)),
    )(xall, w1kw, w2k, pv, sel1, sel2)
    # .view(B, 1, -1) — pure metadata reshape in the wrapper (C-major flatten).
    return out.reshape(B, 1, -1)


def init_params(key, input_c):
    k1, k2 = jax.random.split(key)
    eps = 1e-5
    c1_out = 2 * input_c
    # Kaiming-normal conv weights (fan_in, gain=sqrt(2)), zero biases.
    w1 = jax.random.normal(k1, (c1_out, input_c, 3, 3), jnp.float32) * math.sqrt(2.0 / (input_c * 9))
    w2 = jax.random.normal(k2, (input_c, c1_out, 3, 3), jnp.float32) * math.sqrt(2.0 / (c1_out * 9))

    def bn_affine(n):
        gamma = jnp.ones((n,), jnp.float32)
        beta = jnp.zeros((n,), jnp.float32)
        mean = jnp.zeros((n,), jnp.float32)
        var = jnp.ones((n,), jnp.float32)
        scale = gamma / jnp.sqrt(var + eps)
        shift = beta - mean * scale
        return scale, shift

    scale1, shift1 = bn_affine(c1_out)
    scale2, shift2 = bn_affine(input_c)
    return dict(
        w1=w1, b1=jnp.zeros((c1_out,), jnp.float32),
        w2=w2, b2=jnp.zeros((input_c,), jnp.float32),
        scale1=scale1, shift1=shift1, scale2=scale2, shift2=shift2,
        a1=jnp.full((1,), 0.25, jnp.float32),   # PReLU default init
        a2=jnp.full((1,), 0.25, jnp.float32))


def reference_forward(x, params, patch_size):
    """Pure-JAX reference (mirrors the PyTorch forward, eval-mode BN)."""
    dn = ('NCHW', 'OIHW', 'NCHW')

    def conv(z, w, b, stride, pad):
        y = lax.conv_general_dilated(z, w, (stride, stride),
                                     ((pad, pad), (pad, pad)),
                                     dimension_numbers=dn)
        return y + b[None, :, None, None]

    def pool(z):
        return lax.reduce_window(z, -jnp.inf, lax.max, (1, 1, 2, 2), (1, 1, 2, 2), 'VALID')

    def prelu(z, a):
        return jnp.where(z > 0, z, a[0] * z)

    def bn(z, s, t):
        return z * s[None, :, None, None] + t[None, :, None, None]

    y = prelu(pool(bn(conv(x, params['w1'], params['b1'], 2, 1),
                      params['scale1'], params['shift1'])), params['a1'])
    y = prelu(pool(bn(conv(y, params['w2'], params['b2'], 1, 1),
                      params['scale2'], params['shift2'])), params['a2'])
    dx = patch_size // 2
    identity = x[:, :, dx, dx][:, :, None, None]
    out = identity * y + identity
    return out.reshape(x.shape[0], 1, -1)


if __name__ == "__main__":
    key = jax.random.PRNGKey(0)
    kp, kx = jax.random.split(key)
    input_c, patch_size, batch = 4, 16, 2

    params = init_params(kp, input_c)
    x = jax.random.normal(kx, (batch, input_c, patch_size, patch_size), jnp.float32)

    fwd = jax.jit(functools.partial(spatial_attention_forward, patch_size=patch_size))
    out = jax.block_until_ready(fwd(x, params))

    assert out.shape == (batch, 1, input_c * (patch_size // 8) ** 2), out.shape

    ref = reference_forward(x, params, patch_size)
    if not bool(jnp.allclose(out, ref, rtol=1e-3, atol=1e-3)):
        raise AssertionError(
            f"Pallas output mismatch vs reference, max abs err = "
            f"{float(jnp.max(jnp.abs(out - ref)))}")

    print("KERNEL_OK")
</pallas_src>

<mosaic_0001>
module attributes {stable_mosaic.version = 11 : i64} {
  func.func @_spatial_attention_kernel(%arg0: i32, %arg1: memref<1x12x576xf32, #tpu.memory_space<vmem>>, %arg2: memref<3x8x12xf32, #tpu.memory_space<vmem>>, %arg3: memref<9x4x8xf32, #tpu.memory_space<vmem>>, %arg4: memref<14x1xf32, #tpu.memory_space<vmem>>, %arg5: memref<536x72xf32, #tpu.memory_space<vmem>>, %arg6: memref<51x8xf32, #tpu.memory_space<vmem>>, %arg7: memref<2x4x4xf32, #tpu.memory_space<vmem>>) attributes {dimension_semantics = [#tpu.dimension_semantics<parallel>], iteration_bounds = array<i64: 1>, scalar_prefetch = 0 : i64, scratch_operands = 0 : i64, tpu.core_type = #tpu.core_type<tc>, window_params = [{transform_indices = @transform_0, window_bounds = array<i64: 1, 12, 576>}, {pipeline_mode = #tpu.pipeline_mode<synchronous>, transform_indices = @transform_1, window_bounds = array<i64: 3, 8, 12>}, {pipeline_mode = #tpu.pipeline_mode<synchronous>, transform_indices = @transform_2, window_bounds = array<i64: 9, 4, 8>}, {pipeline_mode = #tpu.pipeline_mode<synchronous>, transform_indices = @transform_3, window_bounds = array<i64: 14, 1>}, {pipeline_mode = #tpu.pipeline_mode<synchronous>, transform_indices = @transform_4, window_bounds = array<i64: 536, 72>}, {pipeline_mode = #tpu.pipeline_mode<synchronous>, transform_indices = @transform_5, window_bounds = array<i64: 51, 8>}, {transform_indices = @transform_6, window_bounds = array<i64: 2, 4, 4>}]} {
    %c0 = arith.constant 0 : index
    %c0_0 = arith.constant 0 : index
    %0 = vector.load %arg4[%c0, %c0_0] : memref<14x1xf32, #tpu.memory_space<vmem>>, vector<14x1xf32>
    %1 = vector.extract_strided_slice %0 {offsets = [0, 0], sizes = [8, 1], strides = [1, 1]} : vector<14x1xf32> to vector<8x1xf32>
    %2 = vector.extract_strided_slice %0 {offsets = [8, 0], sizes = [4, 1], strides = [1, 1]} : vector<14x1xf32> to vector<4x1xf32>
    %3 = vector.extract_strided_slice %0 {offsets = [12, 0], sizes = [1, 1], strides = [1, 1]} : vector<14x1xf32> to vector<1x1xf32>
    %4 = vector.extract %3[0, 0] : f32 from vector<1x1xf32>
    %5 = vector.extract_strided_slice %0 {offsets = [13, 0], sizes = [1, 1], strides = [1, 1]} : vector<14x1xf32> to vector<1x1xf32>
    %6 = vector.extract %5[0, 0] : f32 from vector<1x1xf32>
    %c0_1 = arith.constant 0 : index
    %c0_2 = arith.constant 0 : index
    %c0_3 = arith.constant 0 : index
    %7 = vector.load %arg1[%c0_1, %c0_2, %c0_3] : memref<1x12x576xf32, #tpu.memory_space<vmem>>, vector<1x12x576xf32>
    %8 = vector.shape_cast %7 : vector<1x12x576xf32> to vector<12x576xf32>
    %c0_4 = arith.constant 0 : index
    %c0_5 = arith.constant 0 : index
    %c0_6 = arith.constant 0 : index
    %9 = vector.load %arg2[%c0_4, %c0_5, %c0_6] : memref<3x8x12xf32, #tpu.memory_space<vmem>>, vector<1x8x12xf32>
    %10 = vector.shape_cast %9 : vector<1x8x12xf32> to vector<8x12xf32>
    %11 = vector.extract_strided_slice %8 {offsets = [0, 0], sizes = [12, 574], strides = [1, 1]} : vector<12x576xf32> to vector<12x574xf32>
    %cst = arith.constant dense<0.000000e+00> : vector<8x574xf32>
    %12 = tpu.matmul %10, %11, %cst {dimension_numbers = #tpu.dot_dimension_numbers<[1], [0], [0], [1], [0, 0, 1, 1], [], []>} : vector<8x12xf32>, vector<12x574xf32>, vector<8x574xf32> -> vector<8x574xf32>
    %13 = vector.broadcast %1 : vector<8x1xf32> to vector<8x574xf32>
    %14 = arith.addf %13, %12 : vector<8x574xf32>
    %c1 = arith.constant 1 : index
    %c0_7 = arith.constant 0 : index
    %c0_8 = arith.constant 0 : index
    %15 = vector.load %arg2[%c1, %c0_7, %c0_8] : memref<3x8x12xf32, #tpu.memory_space<vmem>>, vector<1x8x12xf32>
    %16 = vector.shape_cast %15 : vector<1x8x12xf32> to vector<8x12xf32>
    %17 = vector.extract_strided_slice %8 {offsets = [0, 1], sizes = [12, 574], strides = [1, 1]} : vector<12x576xf32> to vector<12x574xf32>
    %cst_9 = arith.constant dense<0.000000e+00> : vector<8x574xf32>
    %18 = tpu.matmul %16, %17, %cst_9 {dimension_numbers = #tpu.dot_dimension_numbers<[1], [0], [0], [1], [0, 0, 1, 1], [], []>} : vector<8x12xf32>, vector<12x574xf32>, vector<8x574xf32> -> vector<8x574xf32>
    %19 = arith.addf %14, %18 : vector<8x574xf32>
    %c2 = arith.constant 2 : index
    %c0_10 = arith.constant 0 : index
    %c0_11 = arith.constant 0 : index
    %20 = vector.load %arg2[%c2, %c0_10, %c0_11] : memref<3x8x12xf32, #tpu.memory_space<vmem>>, vector<1x8x12xf32>
    %21 = vector.shape_cast %20 : vector<1x8x12xf32> to vector<8x12xf32>
    %22 = vector.extract_strided_slice %8 {offsets = [0, 2], sizes = [12, 574], strides = [1, 1]} : vector<12x576xf32> to vector<12x574xf32>
    %cst_12 = arith.constant dense<0.000000e+00> : vector<8x574xf32>
    %23 = tpu.matmul %21, %22, %cst_12 {dimension_numbers = #tpu.dot_dimension_numbers<[1], [0], [0], [1], [0, 0, 1, 1], [], []>} : vector<8x12xf32>, vector<12x574xf32>, vector<8x574xf32> -> vector<8x574xf32>
    %24 = arith.addf %19, %23 : vector<8x574xf32>
    %25 = vector.extract_strided_slice %24 {offsets = [0, 0], sizes = [8, 536], strides = [1, 1]} : vector<8x574xf32> to vector<8x536xf32>
    %26 = vector.extract_strided_slice %24 {offsets = [0, 2], sizes = [8, 536], strides = [1, 1]} : vector<8x574xf32> to vector<8x536xf32>
    %27 = arith.maximumf %25, %26 : vector<8x536xf32>
    %28 = vector.extract_strided_slice %24 {offsets = [0, 36], sizes = [8, 536], strides = [1, 1]} : vector<8x574xf32> to vector<8x536xf32>
    %29 = arith.maximumf %27, %28 : vector<8x536xf32>
    %30 = vector.extract_strided_slice %24 {offsets = [0, 38], sizes = [8, 536], strides = [1, 1]} : vector<8x574xf32> to vector<8x536xf32>
    %31 = arith.maximumf %29, %30 : vector<8x536xf32>
    %c0_13 = arith.constant 0 : index
    %c0_14 = arith.constant 0 : index
    %32 = vector.load %arg5[%c0_13, %c0_14] : memref<536x72xf32, #tpu.memory_space<vmem>>, vector<536x72xf32>
    %cst_15 = arith.constant dense<0.000000e+00> : vector<8x72xf32>
    %33 = tpu.matmul %31, %32, %cst_15 {dimension_numbers = #tpu.dot_dimension_numbers<[1], [0], [0], [1], [0, 0, 1, 1], [], []>} : vector<8x536xf32>, vector<536x72xf32>, vector<8x72xf32> -> vector<8x72xf32>
    %cst_16 = arith.constant 0.000000e+00 : f32
    %34 = vector.broadcast %cst_16 : f32 to vector<8x72xf32>
    %35 = arith.cmpf ogt, %33, %34 : vector<8x72xf32>
    %36 = vector.broadcast %4 : f32 to vector<8x72xf32>
    %37 = arith.mulf %36, %33 : vector<8x72xf32>
    %38 = arith.select %35, %33, %37 : vector<8x72xi1>, vector<8x72xf32>
    %c0_17 = arith.constant 0 : index
    %c0_18 = arith.constant 0 : index
    %c0_19 = arith.constant 0 : index
    %39 = vector.load %arg3[%c0_17, %c0_18, %c0_19] : memref<9x4x8xf32, #tpu.memory_space<vmem>>, vector<1x4x8xf32>
    %40 = vector.shape_cast %39 : vector<1x4x8xf32> to vector<4x8xf32>
    %41 = vector.extract_strided_slice %38 {offsets = [0, 0], sizes = [8, 58], strides = [1, 1]} : vector<8x72xf32> to vector<8x58xf32>
    %cst_20 = arith.constant dense<0.000000e+00> : vector<4x58xf32>
    %42 = tpu.matmul %40, %41, %cst_20 {dimension_numbers = #tpu.dot_dimension_numbers<[1], [0], [0], [1], [0, 0, 1, 1], [], []>} : vector<4x8xf32>, vector<8x58xf32>, vector<4x58xf32> -> vector<4x58xf32>
    %43 = vector.broadcast %2 : vector<4x1xf32> to vector<4x58xf32>
    %44 = arith.addf %43, %42 : vector<4x58xf32>
    %c1_21 = arith.constant 1 : index
    %c0_22 = arith.constant 0 : index
    %c0_23 = arith.constant 0 : index
    %45 = vector.load %arg3[%c1_21, %c0_22, %c0_23] : memref<9x4x8xf32, #tpu.memory_space<vmem>>, vector<1x4x8xf32>
    %46 = vector.shape_cast %45 : vector<1x4x8xf32> to vector<4x8xf32>
    %47 = vector.extract_strided_slice %38 {offsets = [0, 1], sizes = [8, 58], strides = [1, 1]} : vector<8x72xf32> to vector<8x58xf32>
    %cst_24 = arith.constant dense<0.000000e+00> : vector<4x58xf32>
    %48 = tpu.matmul %46, %47, %cst_24 {dimension_numbers = #tpu.dot_dimension_numbers<[1], [0], [0], [1], [0, 0, 1, 1], [], []>} : vector<4x8xf32>, vector<8x58xf32>, vector<4x58xf32> -> vector<4x58xf32>
    %49 = arith.addf %44, %48 : vector<4x58xf32>
    %c2_25 = arith.constant 2 : index
    %c0_26 = arith.constant 0 : index
    %c0_27 = arith.constant 0 : index
    %50 = vector.load %arg3[%c2_25, %c0_26, %c0_27] : memref<9x4x8xf32, #tpu.memory_space<vmem>>, vector<1x4x8xf32>
    %51 = vector.shape_cast %50 : vector<1x4x8xf32> to vector<4x8xf32>
    %52 = vector.extract_strided_slice %38 {offsets = [0, 2], sizes = [8, 58], strides = [1, 1]} : vector<8x72xf32> to vector<8x58xf32>
    %cst_28 = arith.constant dense<0.000000e+00> : vector<4x58xf32>
    %53 = tpu.matmul %51, %52, %cst_28 {dimension_numbers = #tpu.dot_dimension_numbers<[1], [0], [0], [1], [0, 0, 1, 1], [], []>} : vector<4x8xf32>, vector<8x58xf32>, vector<4x58xf32> -> vector<4x58xf32>
    %54 = arith.addf %49, %53 : vector<4x58xf32>
    %c3 = arith.constant 3 : index
    %c0_29 = arith.constant 0 : index
    %c0_30 = arith.constant 0 : index
    %55 = vector.load %arg3[%c3, %c0_29, %c0_30] : memref<9x4x8xf32, #tpu.memory_space<vmem>>, vector<1x4x8xf32>
    %56 = vector.shape_cast %55 : vector<1x4x8xf32> to vector<4x8xf32>
    %57 = vector.extract_strided_slice %38 {offsets = [0, 6], sizes = [8, 58], strides = [1, 1]} : vector<8x72xf32> to vector<8x58xf32>
    %cst_31 = arith.constant dense<0.000000e+00> : vector<4x58xf32>
    %58 = tpu.matmul %56, %57, %cst_31 {dimension_numbers = #tpu.dot_dimension_numbers<[1], [0], [0], [1], [0, 0, 1, 1], [], []>} : vector<4x8xf32>, vector<8x58xf32>, vector<4x58xf32> -> vector<4x58xf32>
    %59 = arith.addf %54, %58 : vector<4x58xf32>
    %c4 = arith.constant 4 : index
    %c0_32 = arith.constant 0 : index
    %c0_33 = arith.constant 0 : index
    %60 = vector.load %arg3[%c4, %c0_32, %c0_33] : memref<9x4x8xf32, #tpu.memory_space<vmem>>, vector<1x4x8xf32>
    %61 = vector.shape_cast %60 : vector<1x4x8xf32> to vector<4x8xf32>
    %62 = vector.extract_strided_slice %38 {offsets = [0, 7], sizes = [8, 58], strides = [1, 1]} : vector<8x72xf32> to vector<8x58xf32>
    %cst_34 = arith.constant dense<0.000000e+00> : vector<4x58xf32>
    %63 = tpu.matmul %61, %62, %cst_34 {dimension_numbers = #tpu.dot_dimension_numbers<[1], [0], [0], [1], [0, 0, 1, 1], [], []>} : vector<4x8xf32>, vector<8x58xf32>, vector<4x58xf32> -> vector<4x58xf32>
    %64 = arith.addf %59, %63 : vector<4x58xf32>
    %c5 = arith.constant 5 : index
    %c0_35 = arith.constant 0 : index
    %c0_36 = arith.constant 0 : index
    %65 = vector.load %arg3[%c5, %c0_35, %c0_36] : memref<9x4x8xf32, #tpu.memory_space<vmem>>, vector<1x4x8xf32>
    %66 = vector.shape_cast %65 : vector<1x4x8xf32> to vector<4x8xf32>
    %67 = vector.extract_strided_slice %38 {offsets = [0, 8], sizes = [8, 58], strides = [1, 1]} : vector<8x72xf32> to vector<8x58xf32>
    %cst_37 = arith.constant dense<0.000000e+00> : vector<4x58xf32>
    %68 = tpu.matmul %66, %67, %cst_37 {dimension_numbers = #tpu.dot_dimension_numbers<[1], [0], [0], [1], [0, 0, 1, 1], [], []>} : vector<4x8xf32>, vector<8x58xf32>, vector<4x58xf32> -> vector<4x58xf32>
    %69 = arith.addf %64, %68 : vector<4x58xf32>
    %c6 = arith.constant 6 : index
    %c0_38 = arith.constant 0 : index
    %c0_39 = arith.constant 0 : index
    %70 = vector.load %arg3[%c6, %c0_38, %c0_39] : memref<9x4x8xf32, #tpu.memory_space<vmem>>, vector<1x4x8xf32>
    %71 = vector.shape_cast %70 : vector<1x4x8xf32> to vector<4x8xf32>
    %72 = vector.extract_strided_slice %38 {offsets = [0, 12], sizes = [8, 58], strides = [1, 1]} : vector<8x72xf32> to vector<8x58xf32>
    %cst_40 = arith.constant dense<0.000000e+00> : vector<4x58xf32>
    %73 = tpu.matmul %71, %72, %cst_40 {dimension_numbers = #tpu.dot_dimension_numbers<[1], [0], [0], [1], [0, 0, 1, 1], [], []>} : vector<4x8xf32>, vector<8x58xf32>, vector<4x58xf32> -> vector<4x58xf32>
    %74 = arith.addf %69, %73 : vector<4x58xf32>
    %c7 = arith.constant 7 : index
    %c0_41 = arith.constant 0 : index
    %c0_42 = arith.constant 0 : index
    %75 = vector.load %arg3[%c7, %c0_41, %c0_42] : memref<9x4x8xf32, #tpu.memory_space<vmem>>, vector<1x4x8xf32>
    %76 = vector.shape_cast %75 : vector<1x4x8xf32> to vector<4x8xf32>
    %77 = vector.extract_strided_slice %38 {offsets = [0, 13], sizes = [8, 58], strides = [1, 1]} : vector<8x72xf32> to vector<8x58xf32>
    %cst_43 = arith.constant dense<0.000000e+00> : vector<4x58xf32>
    %78 = tpu.matmul %76, %77, %cst_43 {dimension_numbers = #tpu.dot_dimension_numbers<[1], [0], [0], [1], [0, 0, 1, 1], [], []>} : vector<4x8xf32>, vector<8x58xf32>, vector<4x58xf32> -> vector<4x58xf32>
    %79 = arith.addf %74, %78 : vector<4x58xf32>
    %c8 = arith.constant 8 : index
    %c0_44 = arith.constant 0 : index
    %c0_45 = arith.constant 0 : index
    %80 = vector.load %arg3[%c8, %c0_44, %c0_45] : memref<9x4x8xf32, #tpu.memory_space<vmem>>, vector<1x4x8xf32>
    %81 = vector.shape_cast %80 : vector<1x4x8xf32> to vector<4x8xf32>
    %82 = vector.extract_strided_slice %38 {offsets = [0, 14], sizes = [8, 58], strides = [1, 1]} : vector<8x72xf32> to vector<8x58xf32>
    %cst_46 = arith.constant dense<0.000000e+00> : vector<4x58xf32>
    %83 = tpu.matmul %81, %82, %cst_46 {dimension_numbers = #tpu.dot_dimension_numbers<[1], [0], [0], [1], [0, 0, 1, 1], [], []>} : vector<4x8xf32>, vector<8x58xf32>, vector<4x58xf32> -> vector<4x58xf32>
    %84 = arith.addf %79, %83 : vector<4x58xf32>
    %85 = vector.extract_strided_slice %84 {offsets = [0, 0], sizes = [4, 51], strides = [1, 1]} : vector<4x58xf32> to vector<4x51xf32>
    %86 = vector.extract_strided_slice %84 {offsets = [0, 1], sizes = [4, 51], strides = [1, 1]} : vector<4x58xf32> to vector<4x51xf32>
    %87 = arith.maximumf %85, %86 : vector<4x51xf32>
    %88 = vector.extract_strided_slice %84 {offsets = [0, 6], sizes = [4, 51], strides = [1, 1]} : vector<4x58xf32> to vector<4x51xf32>
    %89 = arith.maximumf %87, %88 : vector<4x51xf32>
    %90 = vector.extract_strided_slice %84 {offsets = [0, 7], sizes = [4, 51], strides = [1, 1]} : vector<4x58xf32> to vector<4x51xf32>
    %91 = arith.maximumf %89, %90 : vector<4x51xf32>
    %c0_47 = arith.constant 0 : index
    %c0_48 = arith.constant 0 : index
    %92 = vector.load %arg6[%c0_47, %c0_48] : memref<51x8xf32, #tpu.memory_space<vmem>>, vector<51x8xf32>
    %cst_49 = arith.constant dense<0.000000e+00> : vector<4x8xf32>
    %93 = tpu.matmul %91, %92, %cst_49 {dimension_numbers = #tpu.dot_dimension_numbers<[1], [0], [0], [1], [0, 0, 1, 1], [], []>} : vector<4x51xf32>, vector<51x8xf32>, vector<4x8xf32> -> vector<4x8xf32>
    %cst_50 = arith.constant 0.000000e+00 : f32
    %94 = vector.broadcast %cst_50 : f32 to vector<4x8xf32>
    %95 = arith.cmpf ogt, %93, %94 : vector<4x8xf32>
    %96 = vector.broadcast %6 : f32 to vector<4x8xf32>
    %97 = arith.mulf %96, %93 : vector<4x8xf32>
    %98 = arith.select %95, %93, %97 : vector<4x8xi1>, vector<4x8xf32>
    %99 = vector.extract_strided_slice %8 {offsets = [0, 171], sizes = [4, 1], strides = [1, 1]} : vector<12x576xf32> to vector<4x1xf32>
    %100 = vector.extract_strided_slice %98 {offsets = [0, 0], sizes = [4, 4], strides = [1, 1]} : vector<4x8xf32> to vector<4x4xf32>
    %cst_51 = arith.constant 1.000000e+00 : f32
    %101 = vector.broadcast %cst_51 : f32 to vector<4x4xf32>
    %102 = arith.addf %100, %101 : vector<4x4xf32>
    %103 = vector.broadcast %99 : vector<4x1xf32> to vector<4x4xf32>
    %104 = arith.mulf %103, %102 : vector<4x4xf32>
    %c0_52 = arith.constant 0 : index
    %c0_53 = arith.constant 0 : index
    %c0_54 = arith.constant 0 : index
    %105 = vector.load %arg7[%c0_52, %c0_53, %c0_54] : memref<2x4x4xf32, #tpu.memory_space<vmem>>, vector<1x4x4xf32>
    %106 = vector.shape_cast %105 : vector<1x4x4xf32> to vector<4x4xf32>
    %107 = vector.shape_cast %104 : vector<4x4xf32> to vector<1x4x4xf32>
    tpu.vector_store %arg7[%c0_52, %c0_53, %c0_54], %107 {strides = array<i32>} : memref<2x4x4xf32, #tpu.memory_space<vmem>>, vector<1x4x4xf32>,
    %108 = vector.extract_strided_slice %8 {offsets = [0, 459], sizes = [4, 1], strides = [1, 1]} : vector<12x576xf32> to vector<4x1xf32>
    %109 = vector.extract_strided_slice %98 {offsets = [0, 4], sizes = [4, 4], strides = [1, 1]} : vector<4x8xf32> to vector<4x4xf32>
    %cst_55 = arith.constant 1.000000e+00 : f32
    %110 = vector.broadcast %cst_55 : f32 to vector<4x4xf32>
    %111 = arith.addf %109, %110 : vector<4x4xf32>
    %112 = vector.broadcast %108 : vector<4x1xf32> to vector<4x4xf32>
    %113 = arith.mulf %112, %111 : vector<4x4xf32>
    %c1_56 = arith.constant 1 : index
    %c0_57 = arith.constant 0 : index
    %c0_58 = arith.constant 0 : index
    %114 = vector.load %arg7[%c1_56, %c0_57, %c0_58] : memref<2x4x4xf32, #tpu.memory_space<vmem>>, vector<1x4x4xf32>
    %115 = vector.shape_cast %114 : vector<1x4x4xf32> to vector<4x4xf32>
    %116 = vector.shape_cast %113 : vector<4x4xf32> to vector<1x4x4xf32>
    tpu.vector_store %arg7[%c1_56, %c0_57, %c0_58], %116 {strides = array<i32>} : memref<2x4x4xf32, #tpu.memory_space<vmem>>, vector<1x4x4xf32>,
    return
  }
  func.func @transform_0(%arg0: i32) -> (i32, i32, i32) {
    %c0_i32 = arith.constant 0 : i32
    %c0_i32_0 = arith.constant 0 : i32
    %c0_i32_1 = arith.constant 0 : i32
    return %arg0, %c0_i32, %c0_i32_0 : i32, i32, i32
  }
  func.func @transform_1(%arg0: i32) -> (i32, i32, i32) {
    %c0_i32 = arith.constant 0 : i32
    %c0_i32_0 = arith.constant 0 : i32
    %c0_i32_1 = arith.constant 0 : i32
    %c0_i32_2 = arith.constant 0 : i32
    return %c0_i32, %c0_i32_0, %c0_i32_1 : i32, i32, i32
  }
  func.func @transform_2(%arg0: i32) -> (i32, i32, i32) {
    %c0_i32 = arith.constant 0 : i32
    %c0_i32_0 = arith.constant 0 : i32
    %c0_i32_1 = arith.constant 0 : i32
    %c0_i32_2 = arith.constant 0 : i32
    return %c0_i32, %c0_i32_0, %c0_i32_1 : i32, i32, i32
  }
  func.func @transform_3(%arg0: i32) -> (i32, i32) {
    %c0_i32 = arith.constant 0 : i32
    %c0_i32_0 = arith.constant 0 : i32
    %c0_i32_1 = arith.constant 0 : i32
    return %c0_i32, %c0_i32_0 : i32, i32
  }
  func.func @transform_4(%arg0: i32) -> (i32, i32) {
    %c0_i32 = arith.constant 0 : i32
    %c0_i32_0 = arith.constant 0 : i32
    %c0_i32_1 = arith.constant 0 : i32
    return %c0_i32, %c0_i32_0 : i32, i32
  }
  func.func @transform_5(%arg0: i32) -> (i32, i32) {
    %c0_i32 = arith.constant 0 : i32
    %c0_i32_0 = arith.constant 0 : i32
    %c0_i32_1 = arith.constant 0 : i32
    return %c0_i32, %c0_i32_0 : i32, i32
  }
  func.func @transform_6(%arg0: i32) -> (i32, i32, i32) {
    %c0_i32 = arith.constant 0 : i32
    %c0_i32_0 = arith.constant 0 : i32
    %c0_i32_1 = arith.constant 0 : i32
    return %arg0, %c0_i32, %c0_i32_0 : i32, i32, i32
  }
}

</mosaic_0001>

<llo_original>
// kernel: spatial_attention_forward.1
$region0: #{spatial_attention_forward.1}
  #allocation0 [shape = 'u32[]', space=smem, size = 0x4, offset = 0x4, fixed_abs, tag = 'smem constant byte address 0x4 - core index']
  #allocation1 [shape = 'u32[72,128]{1,0:T(1,128)}', space=vmem, size = 0x9000, scoped, tag = 'internal scratch']
  %s0 = inlined_call_operand.vmem [shape: f32[1,12,576], index: 0, kind: input, shape index: {}]
  %s1 = inlined_call_operand.vmem [shape: f32[3,8,12], index: 1, kind: input, shape index: {}]
  %s2 = inlined_call_operand.vmem [shape: f32[9,4,8], index: 2, kind: input, shape index: {}]
  %s3 = inlined_call_operand.vmem [shape: f32[14,1], index: 3, kind: input, shape index: {}]
  %s4 = inlined_call_operand.vmem [shape: f32[536,72], index: 4, kind: input, shape index: {}]
  %s5 = inlined_call_operand.vmem [shape: f32[51,8], index: 5, kind: input, shape index: {}]
  %s6 = inlined_call_operand.vmem [shape: f32[2,4,4], index: 6, kind: output, shape index: {}]
  %s7 = sld [smem:[#allocation0]]
  $region34: #{spatial_attention_forward.1} parent=0
    _
  %s9 = ssub.s32 1, %s7
  %s10 = scalar_select 0, %s9, %s7
  // Predicated region
  $region2: #{spatial_attention_forward.1} parent=0 // pred_check
    _
  $region3: #{spatial_attention_forward.1} parent=0 // pred_check_branch
    %12 = sbr.rel (0) target = $region5
  $region4: #{spatial_attention_forward.1} parent=0 // pred_region
    _
  $region5: #{spatial_attention_forward.1} parent=0 // pred_fallthru
    _
  // Predicated region
  $region6: #{spatial_attention_forward.1} parent=0 // pred_check
    _
  $region7: #{spatial_attention_forward.1} parent=0 // pred_check_branch
    %14 = sbr.rel (0) target = $region9
  $region8: #{spatial_attention_forward.1} parent=0 // pred_region
    _
  $region9: #{spatial_attention_forward.1} parent=0 // pred_fallthru
    _
  // Predicated region
  $region10: #{spatial_attention_forward.1} parent=0 // pred_check
    _
  $region11: #{spatial_attention_forward.1} parent=0 // pred_check_branch
    %16 = sbr.rel (0) target = $region13
  $region12: #{spatial_attention_forward.1} parent=0 // pred_region
    _
  $region13: #{spatial_attention_forward.1} parent=0 // pred_fallthru
    _
  // Predicated region
  $region14: #{spatial_attention_forward.1} parent=0 // pred_check
    _
  $region15: #{spatial_attention_forward.1} parent=0 // pred_check_branch
    %18 = sbr.rel (0) target = $region17
  $region16: #{spatial_attention_forward.1} parent=0 // pred_region
    _
  $region17: #{spatial_attention_forward.1} parent=0 // pred_fallthru
    _
  // Predicated region
  $region18: #{spatial_attention_forward.1} parent=0 // pred_check
    _
  $region19: #{spatial_attention_forward.1} parent=0 // pred_check_branch
    %20 = sbr.rel (0) target = $region21
  $region20: #{spatial_attention_forward.1} parent=0 // pred_region
    _
  $region21: #{spatial_attention_forward.1} parent=0 // pred_fallthru
    _
  // Predicated region
  $region22: #{spatial_attention_forward.1} parent=0 // pred_check
    _
  $region23: #{spatial_attention_forward.1} parent=0 // pred_check_branch
    %22 = sbr.rel (0) target = $region25
  $region24: #{spatial_attention_forward.1} parent=0 // pred_region
    _
  $region25: #{spatial_attention_forward.1} parent=0 // pred_fallthru
    _
  %v23 = vld [vmem:[%s3] sm:$0xff]
  %v24 = vld [vmem:[%s3 + $0x8] sm:$0x3f]
  %v25 = vrot.slane %v24, 4
  %s26 = vtos %v25
  %v27 = vrot.slane %v24, 5
  %s28 = vtos %v27
  %v29 = vld [vmem:[%s0] sm:$0xff]
  %v30 = vld [vmem:[%s0 + $0x8] sm:$0xff]
  %v31 = vld [vmem:[%s0 + $0x10] sm:$0xff]
  %v32 = vld [vmem:[%s0 + $0x18] sm:$0xff]
  %v33 = vld [vmem:[%s0 + $0x20] sm:$0xff]
  %v34 = vld [vmem:[%s0 + $0x28] sm:$0xf]
  %v35 = vld [vmem:[%s0 + $0x30] sm:$0xf]
  %v36 = vld [vmem:[%s0 + $0x38] sm:$0xf]
  %v37 = vld [vmem:[%s0 + $0x40] sm:$0xf]
  %v38 = vld [vmem:[%s0 + $0x48] sm:$0xf]
  %v39 = vld [vmem:[%s1] sm:$0xff]
  %vm40 = vcmask 97280
  %v42 = vsel %vm40, %v39, 0
  %vm44 = vcmask 1043456
  %v46 = vsel %vm44, %v34, 0
  %v49 = vsel %vm44, %v35, 0
  %v52 = vsel %vm44, %v36, 0
  %v55 = vsel %vm44, %v37, 0
  %v58 = vsel %vm44, %v38, 0
  %60 = vmatpush.msra.mxu0 0.0
  %61 = vmatpush.msra.mxu0 0.0
  %62 = vmatpush.msra.mxu0 0.0
  %63 = vmatpush.msra.mxu0 0.0
  %64 = vmatpush.msra.mxu0 0.0
  %65 = vmatpush.msra.mxu0 0.0
  %66 = vmatpush.msra.mxu0 0.0
  %67 = vmatpush.msra.mxu0 0.0
  %68 = vmatpush.msra.mxu0 0.0
  %69 = vmatpush.msra.mxu0 0.0
  %70 = vmatpush.msra.mxu0 0.0
  %71 = vmatpush.msra.mxu0 0.0
  %72 = vmatpush.msra.mxu0 0.0
  %73 = vmatpush.msra.mxu0 0.0
  %74 = vmatpush.msra.mxu0 %v46
  %75 = vmatpush.msra.mxu0 %v29
  %76 = vmatmul.f32.gmra.mxu0 %v42
  %v77 = vpop.f32.mrf.mxu0
  %v78 = vadd.f32 0.0, %v77
  %79 = vdwg.mxu0
  %80 = vmatpush.msra.mxu0 0.0
  %81 = vmatpush.msra.mxu0 0.0
  %82 = vmatpush.msra.mxu0 0.0
  %83 = vmatpush.msra.mxu0 0.0
  %84 = vmatpush.msra.mxu0 0.0
  %85 = vmatpush.msra.mxu0 0.0
  %86 = vmatpush.msra.mxu0 0.0
  %87 = vmatpush.msra.mxu0 0.0
  %88 = vmatpush.msra.mxu0 0.0
  %89 = vmatpush.msra.mxu0 0.0
  %90 = vmatpush.msra.mxu0 0.0
  %91 = vmatpush.msra.mxu0 0.0
  %92 = vmatpush.msra.mxu0 0.0
  %93 = vmatpush.msra.mxu0 0.0
  %94 = vmatpush.msra.mxu0 %v49
  %95 = vmatpush.msra.mxu0 %v30
  %96 = vmatmul.f32.gmra.mxu0 %v42
  %v97 = vpop.f32.mrf.mxu0
  %v98 = vadd.f32 0.0, %v97
  %99 = vdwg.mxu0
  %100 = vmatpush.msra.mxu0 0.0
  %101 = vmatpush.msra.mxu0 0.0
  %102 = vmatpush.msra.mxu0 0.0
  %103 = vmatpush.msra.mxu0 0.0
  %104 = vmatpush.msra.mxu0 0.0
  %105 = vmatpush.msra.mxu0 0.0
  %106 = vmatpush.msra.mxu0 0.0
  %107 = vmatpush.msra.mxu0 0.0
  %108 = vmatpush.msra.mxu0 0.0
  %109 = vmatpush.msra.mxu0 0.0
  %110 = vmatpush.msra.mxu0 0.0
  %111 = vmatpush.msra.mxu0 0.0
  %112 = vmatpush.msra.mxu0 0.0
  %113 = vmatpush.msra.mxu0 0.0
  %114 = vmatpush.msra.mxu0 %v52
  %115 = vmatpush.msra.mxu0 %v31
  %116 = vmatmul.f32.gmra.mxu0 %v42
  %v117 = vpop.f32.mrf.mxu0
  %v118 = vadd.f32 0.0, %v117
  %119 = vdwg.mxu0
  %120 = vmatpush.msra.mxu0 0.0
  %121 = vmatpush.msra.mxu0 0.0
  %122 = vmatpush.msra.mxu0 0.0
  %123 = vmatpush.msra.mxu0 0.0
  %124 = vmatpush.msra.mxu0 0.0
  %125 = vmatpush.msra.mxu0 0.0
  %126 = vmatpush.msra.mxu0 0.0
  %127 = vmatpush.msra.mxu0 0.0
  %128 = vmatpush.msra.mxu0 0.0
  %129 = vmatpush.msra.mxu0 0.0
  %130 = vmatpush.msra.mxu0 0.0
  %131 = vmatpush.msra.mxu0 0.0
  %132 = vmatpush.msra.mxu0 0.0
  %133 = vmatpush.msra.mxu0 0.0
  %134 = vmatpush.msra.mxu0 %v55
  %135 = vmatpush.msra.mxu0 %v32
  %136 = vmatmul.f32.gmra.mxu0 %v42
  %v137 = vpop.f32.mrf.mxu0
  %v138 = vadd.f32 0.0, %v137
  %139 = vdwg.mxu0
  %140 = vmatpush.msra.mxu0 0.0
  %141 = vmatpush.msra.mxu0 0.0
  %142 = vmatpush.msra.mxu0 0.0
  %143 = vmatpush.msra.mxu0 0.0
  %144 = vmatpush.msra.mxu0 0.0
  %145 = vmatpush.msra.mxu0 0.0
  %146 = vmatpush.msra.mxu0 0.0
  %147 = vmatpush.msra.mxu0 0.0
  %148 = vmatpush.msra.mxu0 0.0
  %149 = vmatpush.msra.mxu0 0.0
  %150 = vmatpush.msra.mxu0 0.0
  %151 = vmatpush.msra.mxu0 0.0
  %152 = vmatpush.msra.mxu0 0.0
  %153 = vmatpush.msra.mxu0 0.0
  %154 = vmatpush.msra.mxu0 %v58
  %155 = vmatpush.msra.mxu0 %v33
  %156 = vmatmul.f32.gmra.mxu0 %v42
  %v157 = vpop.f32.mrf.mxu0
  %v158 = vadd.f32 0.0, %v157
  %159 = vdwg.mxu0
  %161 = vset.pattern.permute.xlu0 0
  %162 = vperm.xlu0 %161, %v23
  %v163 = vpop.permute.xlu0 %162
  %v165 = vadd.f32 %v163, %v78
  %v166 = vadd.f32 %v163, %v98
  %v167 = vadd.f32 %v163, %v118
  %v168 = vadd.f32 %v163, %v138
  %v169 = vadd.f32 %v163, %v158
  %s170 = scalar_lea.vmem %s1, 8
  %v171 = vld [vmem:[%s170] sm:$0xff]
  %177 = vrot.lane.b32.xlu0 %v29, 127
  %v178 = vpop.permute.xlu0 %177
  %179 = vrot.lane.b32.xlu0 %v30, 127
  %v180 = vpop.permute.xlu0 %179
  %181 = vrot.lane.b32.xlu0 %v31, 127
  %v182 = vpop.permute.xlu0 %181
  %183 = vrot.lane.b32.xlu0 %v32, 127
  %v184 = vpop.permute.xlu0 %183
  %185 = vrot.lane.b32.xlu0 %v33, 127
  %v186 = vpop.permute.xlu0 %185
  %187 = vrot.lane.b32.xlu0 %v34, 127
  %v188 = vpop.permute.xlu0 %187
  %189 = vrot.lane.b32.xlu0 %v35, 127
  %v190 = vpop.permute.xlu0 %189
  %191 = vrot.lane.b32.xlu0 %v36, 127
  %v192 = vpop.permute.xlu0 %191
  %193 = vrot.lane.b32.xlu0 %v37, 127
  %v194 = vpop.permute.xlu0 %193
  %195 = vrot.lane.b32.xlu0 %v38, 127
  %v196 = vpop.permute.xlu0 %195
  %vm197 = vcmask 1039360
  %v198 = vsel %vm197, %v178, %v180
  %v199 = vsel %vm197, %v180, %v182
  %v200 = vsel %vm197, %v182, %v184
  %v201 = vsel %vm197, %v184, %v186
  %v202 = vsel %vm197, %v188, %v190
  %v203 = vsel %vm197, %v190, %v192
  %v204 = vsel %vm197, %v192, %v194
  %v205 = vsel %vm197, %v194, %v196
  %v212 = vsel %vm40, %v171, 0
  %v214 = vsel %vm44, %v202, 0
  %v216 = vsel %vm44, %v203, 0
  %v218 = vsel %vm44, %v204, 0
  %v220 = vsel %vm44, %v205, 0
  %v222 = vsel %vm44, %v196, 0
  %224 = vmatpush.msra.mxu0 0.0
  %225 = vmatpush.msra.mxu0 0.0
  %226 = vmatpush.msra.mxu0 0.0
  %227 = vmatpush.msra.mxu0 0.0
  %228 = vmatpush.msra.mxu0 0.0
  %229 = vmatpush.msra.mxu0 0.0
  %230 = vmatpush.msra.mxu0 0.0
  %231 = vmatpush.msra.mxu0 0.0
  %232 = vmatpush.msra.mxu0 0.0
  %233 = vmatpush.msra.mxu0 0.0
  %234 = vmatpush.msra.mxu0 0.0
  %235 = vmatpush.msra.mxu0 0.0
  %236 = vmatpush.msra.mxu0 0.0
  %237 = vmatpush.msra.mxu0 0.0
  %238 = vmatpush.msra.mxu0 %v214
  %239 = vmatpush.msra.mxu0 %v198
  %240 = vmatmul.f32.gmra.mxu0 %v212
  %v241 = vpop.f32.mrf.mxu0
  %v242 = vadd.f32 0.0, %v241
  %243 = vdwg.mxu0
  %244 = vmatpush.msra.mxu0 0.0
  %245 = vmatpush.msra.mxu0 0.0
  %246 = vmatpush.msra.mxu0 0.0
  %247 = vmatpush.msra.mxu0 0.0
  %248 = vmatpush.msra.mxu0 0.0
  %249 = vmatpush.msra.mxu0 0.0
  %250 = vmatpush.msra.mxu0 0.0
  %251 = vmatpush.msra.mxu0 0.0
  %252 = vmatpush.msra.mxu0 0.0
  %253 = vmatpush.msra.mxu0 0.0
  %254 = vmatpush.msra.mxu0 0.0
  %255 = vmatpush.msra.mxu0 0.0
  %256 = vmatpush.msra.mxu0 0.0
  %257 = vmatpush.msra.mxu0 0.0
  %258 = vmatpush.msra.mxu0 %v216
  %259 = vmatpush.msra.mxu0 %v199
  %260 = vmatmul.f32.gmra.mxu0 %v212
  %v261 = vpop.f32.mrf.mxu0
  %v262 = vadd.f32 0.0, %v261
  %263 = vdwg.mxu0
  %264 = vmatpush.msra.mxu0 0.0
  %265 = vmatpush.msra.mxu0 0.0
  %266 = vmatpush.msra.mxu0 0.0
  %267 = vmatpush.msra.mxu0 0.0
  %268 = vmatpush.msra.mxu0 0.0
  %269 = vmatpush.msra.mxu0 0.0
  %270 = vmatpush.msra.mxu0 0.0
  %271 = vmatpush.msra.mxu0 0.0
  %272 = vmatpush.msra.mxu0 0.0
  %273 = vmatpush.msra.mxu0 0.0
  %274 = vmatpush.msra.mxu0 0.0
  %275 = vmatpush.msra.mxu0 0.0
  %276 = vmatpush.msra.mxu0 0.0
  %277 = vmatpush.msra.mxu0 0.0
  %278 = vmatpush.msra.mxu0 %v218
  %279 = vmatpush.msra.mxu0 %v200
  %280 = vmatmul.f32.gmra.mxu0 %v212
  %v281 = vpop.f32.mrf.mxu0
  %v282 = vadd.f32 0.0, %v281
  %283 = vdwg.mxu0
  %284 = vmatpush.msra.mxu0 0.0
  %285 = vmatpush.msra.mxu0 0.0
  %286 = vmatpush.msra.mxu0 0.0
  %287 = vmatpush.msra.mxu0 0.0
  %288 = vmatpush.msra.mxu0 0.0
  %289 = vmatpush.msra.mxu0 0.0
  %290 = vmatpush.msra.mxu0 0.0
  %291 = vmatpush.msra.mxu0 0.0
  %292 = vmatpush.msra.mxu0 0.0
  %293 = vmatpush.msra.mxu0 0.0
  %294 = vmatpush.msra.mxu0 0.0
  %295 = vmatpush.msra.mxu0 0.0
  %296 = vmatpush.msra.mxu0 0.0
  %297 = vmatpush.msra.mxu0 0.0
  %298 = vmatpush.msra.mxu0 %v220
  %299 = vmatpush.msra.mxu0 %v201
  %300 = vmatmul.f32.gmra.mxu0 %v212
  %v301 = vpop.f32.mrf.mxu0
  %v302 = vadd.f32 0.0, %v301
  %303 = vdwg.mxu0
  %304 = vmatpush.msra.mxu0 0.0
  %305 = vmatpush.msra.mxu0 0.0
  %306 = vmatpush.msra.mxu0 0.0
  %307 = vmatpush.msra.mxu0 0.0
  %308 = vmatpush.msra.mxu0 0.0
  %309 = vmatpush.msra.mxu0 0.0
  %310 = vmatpush.msra.mxu0 0.0
  %311 = vmatpush.msra.mxu0 0.0
  %312 = vmatpush.msra.mxu0 0.0
  %313 = vmatpush.msra.mxu0 0.0
  %314 = vmatpush.msra.mxu0 0.0
  %315 = vmatpush.msra.mxu0 0.0
  %316 = vmatpush.msra.mxu0 0.0
  %317 = vmatpush.msra.mxu0 0.0
  %318 = vmatpush.msra.mxu0 %v222
  %319 = vmatpush.msra.mxu0 %v186
  %320 = vmatmul.f32.gmra.mxu0 %v212
  %v321 = vpop.f32.mrf.mxu0
  %v322 = vadd.f32 0.0, %v321
  %323 = vdwg.mxu0
  %v324 = vadd.f32 %v165, %v242
  %v325 = vadd.f32 %v166, %v262
  %v326 = vadd.f32 %v167, %v282
  %v327 = vadd.f32 %v168, %v302
  %v328 = vadd.f32 %v169, %v322
  %s329 = scalar_lea.vmem %s1, 16
  %v330 = vld [vmem:[%s329] sm:$0xff]
  %331 = vrot.lane.b32.xlu0 %v29, 126
  %v332 = vpop.permute.xlu0 %331
  %333 = vrot.lane.b32.xlu0 %v30, 126
  %v334 = vpop.permute.xlu0 %333
  %335 = vrot.lane.b32.xlu0 %v31, 126
  %v336 = vpop.permute.xlu0 %335
  %337 = vrot.lane.b32.xlu0 %v32, 126
  %v338 = vpop.permute.xlu0 %337
  %339 = vrot.lane.b32.xlu0 %v33, 126
  %v340 = vpop.permute.xlu0 %339
  %341 = vrot.lane.b32.xlu0 %v34, 126
  %v342 = vpop.permute.xlu0 %341
  %343 = vrot.lane.b32.xlu0 %v35, 126
  %v344 = vpop.permute.xlu0 %343
  %345 = vrot.lane.b32.xlu0 %v36, 126
  %v346 = vpop.permute.xlu0 %345
  %347 = vrot.lane.b32.xlu0 %v37, 126
  %v348 = vpop.permute.xlu0 %347
  %349 = vrot.lane.b32.xlu0 %v38, 126
  %v350 = vpop.permute.xlu0 %349
  %vm351 = vcmask 1031168
  %v352 = vsel %vm351, %v332, %v334
  %v353 = vsel %vm351, %v334, %v336
  %v354 = vsel %vm351, %v336, %v338
  %v355 = vsel %vm351, %v338, %v340
  %v356 = vsel %vm351, %v342, %v344
  %v357 = vsel %vm351, %v344, %v346
  %v358 = vsel %vm351, %v346, %v348
  %v359 = vsel %vm351, %v348, %v350
  %v366 = vsel %vm40, %v330, 0
  %v368 = vsel %vm44, %v356, 0
  %v370 = vsel %vm44, %v357, 0
  %v372 = vsel %vm44, %v358, 0
  %v374 = vsel %vm44, %v359, 0
  %v376 = vsel %vm44, %v350, 0
  %378 = vmatpush.msra.mxu0 0.0
  %379 = vmatpush.msra.mxu0 0.0
  %380 = vmatpush.msra.mxu0 0.0
  %381 = vmatpush.msra.mxu0 0.0
  %382 = vmatpush.msra.mxu0 0.0
  %383 = vmatpush.msra.mxu0 0.0
  %384 = vmatpush.msra.mxu0 0.0
  %385 = vmatpush.msra.mxu0 0.0
  %386 = vmatpush.msra.mxu0 0.0
  %387 = vmatpush.msra.mxu0 0.0
  %388 = vmatpush.msra.mxu0 0.0
  %389 = vmatpush.msra.mxu0 0.0
  %390 = vmatpush.msra.mxu0 0.0
  %391 = vmatpush.msra.mxu0 0.0
  %392 = vmatpush.msra.mxu0 %v368
  %393 = vmatpush.msra.mxu0 %v352
  %394 = vmatmul.f32.gmra.mxu0 %v366
  %v395 = vpop.f32.mrf.mxu0
  %v396 = vadd.f32 0.0, %v395
  %397 = vdwg.mxu0
  %398 = vmatpush.msra.mxu0 0.0
  %399 = vmatpush.msra.mxu0 0.0
  %400 = vmatpush.msra.mxu0 0.0
  %401 = vmatpush.msra.mxu0 0.0
  %402 = vmatpush.msra.mxu0 0.0
  %403 = vmatpush.msra.mxu0 0.0
  %404 = vmatpush.msra.mxu0 0.0
  %405 = vmatpush.msra.mxu0 0.0
  %406 = vmatpush.msra.mxu0 0.0
  %407 = vmatpush.msra.mxu0 0.0
  %408 = vmatpush.msra.mxu0 0.0
  %409 = vmatpush.msra.mxu0 0.0
  %410 = vmatpush.msra.mxu0 0.0
  %411 = vmatpush.msra.mxu0 0.0
  %412 = vmatpush.msra.mxu0 %v370
  %413 = vmatpush.msra.mxu0 %v353
  %414 = vmatmul.f32.gmra.mxu0 %v366
  %v415 = vpop.f32.mrf.mxu0
  %v416 = vadd.f32 0.0, %v415
  %417 = vdwg.mxu0
  %418 = vmatpush.msra.mxu0 0.0
  %419 = vmatpush.msra.mxu0 0.0
  %420 = vmatpush.msra.mxu0 0.0
  %421 = vmatpush.msra.mxu0 0.0
  %422 = vmatpush.msra.mxu0 0.0
  %423 = vmatpush.msra.mxu0 0.0
  %424 = vmatpush.msra.mxu0 0.0
  %425 = vmatpush.msra.mxu0 0.0
  %426 = vmatpush.msra.mxu0 0.0
  %427 = vmatpush.msra.mxu0 0.0
  %428 = vmatpush.msra.mxu0 0.0
  %429 = vmatpush.msra.mxu0 0.0
  %430 = vmatpush.msra.mxu0 0.0
  %431 = vmatpush.msra.mxu0 0.0
  %432 = vmatpush.msra.mxu0 %v372
  %433 = vmatpush.msra.mxu0 %v354
  %434 = vmatmul.f32.gmra.mxu0 %v366
  %v435 = vpop.f32.mrf.mxu0
  %v436 = vadd.f32 0.0, %v435
  %437 = vdwg.mxu0
  %438 = vmatpush.msra.mxu0 0.0
  %439 = vmatpush.msra.mxu0 0.0
  %440 = vmatpush.msra.mxu0 0.0
  %441 = vmatpush.msra.mxu0 0.0
  %442 = vmatpush.msra.mxu0 0.0
  %443 = vmatpush.msra.mxu0 0.0
  %444 = vmatpush.msra.mxu0 0.0
  %445 = vmatpush.msra.mxu0 0.0
  %446 = vmatpush.msra.mxu0 0.0
  %447 = vmatpush.msra.mxu0 0.0
  %448 = vmatpush.msra.mxu0 0.0
  %449 = vmatpush.msra.mxu0 0.0
  %450 = vmatpush.msra.mxu0 0.0
  %451 = vmatpush.msra.mxu0 0.0
  %452 = vmatpush.msra.mxu0 %v374
  %453 = vmatpush.msra.mxu0 %v355
  %454 = vmatmul.f32.gmra.mxu0 %v366
  %v455 = vpop.f32.mrf.mxu0
  %v456 = vadd.f32 0.0, %v455
  %457 = vdwg.mxu0
  %458 = vmatpush.msra.mxu0 0.0
  %459 = vmatpush.msra.mxu0 0.0
  %460 = vmatpush.msra.mxu0 0.0
  %461 = vmatpush.msra.mxu0 0.0
  %462 = vmatpush.msra.mxu0 0.0
  %463 = vmatpush.msra.mxu0 0.0
  %464 = vmatpush.msra.mxu0 0.0
  %465 = vmatpush.msra.mxu0 0.0
  %466 = vmatpush.msra.mxu0 0.0
  %467 = vmatpush.msra.mxu0 0.0
  %468 = vmatpush.msra.mxu0 0.0
  %469 = vmatpush.msra.mxu0 0.0
  %470 = vmatpush.msra.mxu0 0.0
  %471 = vmatpush.msra.mxu0 0.0
  %472 = vmatpush.msra.mxu0 %v376
  %473 = vmatpush.msra.mxu0 %v340
  %474 = vmatmul.f32.gmra.mxu0 %v366
  %v475 = vpop.f32.mrf.mxu0
  %v476 = vadd.f32 0.0, %v475
  %477 = vdwg.mxu0
  %v478 = vadd.f32 %v324, %v396
  %v479 = vadd.f32 %v325, %v416
  %v480 = vadd.f32 %v326, %v436
  %v481 = vadd.f32 %v327, %v456
  %v482 = vadd.f32 %v328, %v476
  %488 = vrot.lane.b32.xlu0 %v478, 126
  %v489 = vpop.permute.xlu0 %488
  %490 = vrot.lane.b32.xlu0 %v479, 126
  %v491 = vpop.permute.xlu0 %490
  %492 = vrot.lane.b32.xlu0 %v480, 126
  %v493 = vpop.permute.xlu0 %492
  %494 = vrot.lane.b32.xlu0 %v481, 126
  %v495 = vpop.permute.xlu0 %494
  %496 = vrot.lane.b32.xlu0 %v482, 126
  %v497 = vpop.permute.xlu0 %496
  %v498 = vsel %vm351, %v489, %v491
  %v499 = vsel %vm351, %v491, %v493
  %v500 = vsel %vm351, %v493, %v495
  %v501 = vsel %vm351, %v495, %v497
  %v507 = vmax.f32 %v478, %v498
  %v508 = vmax.f32 %v479, %v499
  %v509 = vmax.f32 %v480, %v500
  %v510 = vmax.f32 %v481, %v501
  %v511 = vmax.f32 %v482, %v497
  %512 = vrot.lane.b32.xlu0 %v478, 92
  %v513 = vpop.permute.xlu0 %512
  %514 = vrot.lane.b32.xlu0 %v479, 92
  %v515 = vpop.permute.xlu0 %514
  %516 = vrot.lane.b32.xlu0 %v480, 92
  %v517 = vpop.permute.xlu0 %516
  %518 = vrot.lane.b32.xlu0 %v481, 92
  %v519 = vpop.permute.xlu0 %518
  %520 = vrot.lane.b32.xlu0 %v482, 92
  %v521 = vpop.permute.xlu0 %520
  %vm522 = vcmask 752640
  %v523 = vsel %vm522, %v513, %v515
  %v524 = vsel %vm522, %v515, %v517
  %v525 = vsel %vm522, %v517, %v519
  %v526 = vsel %vm522, %v519, %v521
  %v532 = vmax.f32 %v507, %v523
  %v533 = vmax.f32 %v508, %v524
  %v534 = vmax.f32 %v509, %v525
  %v535 = vmax.f32 %v510, %v526
  %v536 = vmax.f32 %v511, %v521
  %537 = vrot.lane.b32.xlu0 %v478, 90
  %v538 = vpop.permute.xlu0 %537
  %539 = vrot.lane.b32.xlu0 %v479, 90
  %v540 = vpop.permute.xlu0 %539
  %541 = vrot.lane.b32.xlu0 %v480, 90
  %v542 = vpop.permute.xlu0 %541
  %543 = vrot.lane.b32.xlu0 %v481, 90
  %v544 = vpop.permute.xlu0 %543
  %545 = vrot.lane.b32.xlu0 %v482, 90
  %v546 = vpop.permute.xlu0 %545
  %vm547 = vcmask 736256
  %v548 = vsel %vm547, %v538, %v540
  %v549 = vsel %vm547, %v540, %v542
  %v550 = vsel %vm547, %v542, %v544
  %v551 = vsel %vm547, %v544, %v546
  %v557 = vmax.f32 %v532, %v548
  %v558 = vmax.f32 %v533, %v549
  %v559 = vmax.f32 %v534, %v550
  %v560 = vmax.f32 %v535, %v551
  %v561 = vmax.f32 %v536, %v546
  %v562 = vld [vmem:[%s4] sm:$0xff]
  %v563 = vld [vmem:[%s4 + $0x8] sm:$0xff]
  %v564 = vld [vmem:[%s4 + $0x10] sm:$0xff]
  %v565 = vld [vmem:[%s4 + $0x18] sm:$0xff]
  %v566 = vld [vmem:[%s4 + $0x20] sm:$0xff]
  %v567 = vld [vmem:[%s4 + $0x28] sm:$0xff]
  %v568 = vld [vmem:[%s4 + $0x30] sm:$0xff]
  %v569 = vld [vmem:[%s4 + $0x38] sm:$0xff]
  %v570 = vld [vmem:[%s4 + $0x40] sm:$0xff]
  %v571 = vld [vmem:[%s4 + $0x48] sm:$0xff]
  %v572 = vld [vmem:[%s4 + $0x50] sm:$0xff]
  %v573 = vld [vmem:[%s4 + $0x58] sm:$0xff]
  %v574 = vld [vmem:[%s4 + $0x60] sm:$0xff]
  %v575 = vld [vmem:[%s4 + $0x68] sm:$0xff]
  %v576 = vld [vmem:[%s4 + $0x70] sm:$0xff]
  %v577 = vld [vmem:[%s4 + $0x78] sm:$0xff]
  %v578 = vld [vmem:[%s4 + $0x80] sm:$0xff]
  %v579 = vld [vmem:[%s4 + $0x88] sm:$0xff]
  %v580 = vld [vmem:[%s4 + $0x90] sm:$0xff]
  %v581 = vld [vmem:[%s4 + $0x98] sm:$0xff]
  %v582 = vld [vmem:[%s4 + $0xa0] sm:$0xff]
  %v583 = vld [vmem:[%s4 + $0xa8] sm:$0xff]
  %v584 = vld [vmem:[%s4 + $0xb0] sm:$0xff]
  %v585 = vld [vmem:[%s4 + $0xb8] sm:$0xff]
  %v586 = vld [vmem:[%s4 + $0xc0] sm:$0xff]
  %v587 = vld [vmem:[%s4 + $0xc8] sm:$0xff]
  %v588 = vld [vmem:[%s4 + $0xd0] sm:$0xff]
  %v589 = vld [vmem:[%s4 + $0xd8] sm:$0xff]
  %v590 = vld [vmem:[%s4 + $0xe0] sm:$0xff]
  %v591 = vld [vmem:[%s4 + $0xe8] sm:$0xff]
  %v592 = vld [vmem:[%s4 + $0xf0] sm:$0xff]
  %v593 = vld [vmem:[%s4 + $0xf8] sm:$0xff]
  %v594 = vld [vmem:[%s4 + $0x100] sm:$0xff]
  %v595 = vld [vmem:[%s4 + $0x108] sm:$0xff]
  %v596 = vld [vmem:[%s4 + $0x110] sm:$0xff]
  %v597 = vld [vmem:[%s4 + $0x118] sm:$0xff]
  %v598 = vld [vmem:[%s4 + $0x120] sm:$0xff]
  %v599 = vld [vmem:[%s4 + $0x128] sm:$0xff]
  %v600 = vld [vmem:[%s4 + $0x130] sm:$0xff]
  %v601 = vld [vmem:[%s4 + $0x138] sm:$0xff]
  %v602 = vld [vmem:[%s4 + $0x140] sm:$0xff]
  %v603 = vld [vmem:[%s4 + $0x148] sm:$0xff]
  %v604 = vld [vmem:[%s4 + $0x150] sm:$0xff]
  %v605 = vld [vmem:[%s4 + $0x158] sm:$0xff]
  %v606 = vld [vmem:[%s4 + $0x160] sm:$0xff]
  %v607 = vld [vmem:[%s4 + $0x168] sm:$0xff]
  %v608 = vld [vmem:[%s4 + $0x170] sm:$0xff]
  %v609 = vld [vmem:[%s4 + $0x178] sm:$0xff]
  %v610 = vld [vmem:[%s4 + $0x180] sm:$0xff]
  %v611 = vld [vmem:[%s4 + $0x188] sm:$0xff]
  %v612 = vld [vmem:[%s4 + $0x190] sm:$0xff]
  %v613 = vld [vmem:[%s4 + $0x198] sm:$0xff]
  %v614 = vld [vmem:[%s4 + $0x1a0] sm:$0xff]
  %v615 = vld [vmem:[%s4 + $0x1a8] sm:$0xff]
  %v616 = vld [vmem:[%s4 + $0x1b0] sm:$0xff]
  %v617 = vld [vmem:[%s4 + $0x1b8] sm:$0xff]
  %v618 = vld [vmem:[%s4 + $0x1c0] sm:$0xff]
  %v619 = vld [vmem:[%s4 + $0x1c8] sm:$0xff]
  %v620 = vld [vmem:[%s4 + $0x1d0] sm:$0xff]
  %v621 = vld [vmem:[%s4 + $0x1d8] sm:$0xff]
  %v622 = vld [vmem:[%s4 + $0x1e0] sm:$0xff]
  %v623 = vld [vmem:[%s4 + $0x1e8] sm:$0xff]
  %v624 = vld [vmem:[%s4 + $0x1f0] sm:$0xff]
  %v625 = vld [vmem:[%s4 + $0x1f8] sm:$0xff]
  %v626 = vld [vmem:[%s4 + $0x200] sm:$0xff]
  %v627 = vld [vmem:[%s4 + $0x208] sm:$0xff]
  %v628 = vld [vmem:[%s4 + $0x210] sm:$0xff]
  %vm629 = vcmask 195584
  %v631 = vsel %vm629, %v561, 0
  %633 = vmatpush.msra.mxu0 %v577
  %634 = vmatpush.msra.mxu0 %v576
  %635 = vmatpush.msra.mxu0 %v575
  %636 = vmatpush.msra.mxu0 %v574
  %637 = vmatpush.msra.mxu0 %v573
  %638 = vmatpush.msra.mxu0 %v572
  %639 = vmatpush.msra.mxu0 %v571
  %640 = vmatpush.msra.mxu0 %v570
  %641 = vmatpush.msra.mxu0 %v569
  %642 = vmatpush.msra.mxu0 %v568
  %643 = vmatpush.msra.mxu0 %v567
  %644 = vmatpush.msra.mxu0 %v566
  %645 = vmatpush.msra.mxu0 %v565
  %646 = vmatpush.msra.mxu0 %v564
  %647 = vmatpush.msra.mxu0 %v563
  %648 = vmatpush.msra.mxu0 %v562
  %649 = vmatmul.f32.gmra.mxu0 %v557
  %v650 = vpop.f32.mrf.mxu0
  %v651 = vadd.f32 0.0, %v650
  %652 = vdwg.mxu0
  %653 = vmatpush.msra.mxu0 %v593
  %654 = vmatpush.msra.mxu0 %v592
  %655 = vmatpush.msra.mxu0 %v591
  %656 = vmatpush.msra.mxu0 %v590
  %657 = vmatpush.msra.mxu0 %v589
  %658 = vmatpush.msra.mxu0 %v588
  %659 = vmatpush.msra.mxu0 %v587
  %660 = vmatpush.msra.mxu0 %v586
  %661 = vmatpush.msra.mxu0 %v585
  %662 = vmatpush.msra.mxu0 %v584
  %663 = vmatpush.msra.mxu0 %v583
  %664 = vmatpush.msra.mxu0 %v582
  %665 = vmatpush.msra.mxu0 %v581
  %666 = vmatpush.msra.mxu0 %v580
  %667 = vmatpush.msra.mxu0 %v579
  %668 = vmatpush.msra.mxu0 %v578
  %669 = vmatmul.f32.gmra.mxu0 %v558
  %v670 = vpop.f32.mrf.mxu0
  %v671 = vadd.f32 %v651, %v670
  %672 = vdwg.mxu0
  %673 = vmatpush.msra.mxu0 %v609
  %674 = vmatpush.msra.mxu0 %v608
  %675 = vmatpush.msra.mxu0 %v607
  %676 = vmatpush.msra.mxu0 %v606
  %677 = vmatpush.msra.mxu0 %v605
  %678 = vmatpush.msra.mxu0 %v604
  %679 = vmatpush.msra.mxu0 %v603
  %680 = vmatpush.msra.mxu0 %v602
  %681 = vmatpush.msra.mxu0 %v601
  %682 = vmatpush.msra.mxu0 %v600
  %683 = vmatpush.msra.mxu0 %v599
  %684 = vmatpush.msra.mxu0 %v598
  %685 = vmatpush.msra.mxu0 %v597
  %686 = vmatpush.msra.mxu0 %v596
  %687 = vmatpush.msra.mxu0 %v595
  %688 = vmatpush.msra.mxu0 %v594
  %689 = vmatmul.f32.gmra.mxu0 %v559
  %v690 = vpop.f32.mrf.mxu0
  %v691 = vadd.f32 %v671, %v690
  %692 = vdwg.mxu0
  %693 = vmatpush.msra.mxu0 %v625
  %694 = vmatpush.msra.mxu0 %v624
  %695 = vmatpush.msra.mxu0 %v623
  %696 = vmatpush.msra.mxu0 %v622
  %697 = vmatpush.msra.mxu0 %v621
  %698 = vmatpush.msra.mxu0 %v620
  %699 = vmatpush.msra.mxu0 %v619
  %700 = vmatpush.msra.mxu0 %v618
  %701 = vmatpush.msra.mxu0 %v617
  %702 = vmatpush.msra.mxu0 %v616
  %703 = vmatpush.msra.mxu0 %v615
  %704 = vmatpush.msra.mxu0 %v614
  %705 = vmatpush.msra.mxu0 %v613
  %706 = vmatpush.msra.mxu0 %v612
  %707 = vmatpush.msra.mxu0 %v611
  %708 = vmatpush.msra.mxu0 %v610
  %709 = vmatmul.f32.gmra.mxu0 %v560
  %v710 = vpop.f32.mrf.mxu0
  %v711 = vadd.f32 %v691, %v710
  %712 = vdwg.mxu0
  %713 = vmatpush.msra.mxu0 0.0
  %714 = vmatpush.msra.mxu0 0.0
  %715 = vmatpush.msra.mxu0 0.0
  %716 = vmatpush.msra.mxu0 0.0
  %717 = vmatpush.msra.mxu0 0.0
  %718 = vmatpush.msra.mxu0 0.0
  %719 = vmatpush.msra.mxu0 0.0
  %720 = vmatpush.msra.mxu0 0.0
  %721 = vmatpush.msra.mxu0 0.0
  %722 = vmatpush.msra.mxu0 0.0
  %723 = vmatpush.msra.mxu0 0.0
  %724 = vmatpush.msra.mxu0 0.0
  %725 = vmatpush.msra.mxu0 0.0
  %726 = vmatpush.msra.mxu0 %v628
  %727 = vmatpush.msra.mxu0 %v627
  %728 = vmatpush.msra.mxu0 %v626
  %729 = vmatmul.f32.gmra.mxu0 %v631
  %v730 = vpop.f32.mrf.mxu0
  %v731 = vadd.f32 %v711, %v730
  %732 = vdwg.mxu0
  %vm733 = vcmp.gt.f32.partialorder %v731, 0.0
  %v734 = vstv %s26
  %v735 = vmul.f32 %v734, %v731
  %v736 = vsel %vm733, %v731, %v735
  %v737 = vld [vmem:[%s2] sm:$0xf]
  %vm738 = vcmask 64512
  %v740 = vsel %vm738, %v737, 0
  %742 = vmatpush.msra.mxu0 0.0
  %743 = vmatpush.msra.mxu0 0.0
  %744 = vmatpush.msra.mxu0 0.0
  %745 = vmatpush.msra.mxu0 0.0
  %746 = vmatpush.msra.mxu0 0.0
  %747 = vmatpush.msra.mxu0 0.0
  %748 = vmatpush.msra.mxu0 0.0
  %749 = vmatpush.msra.mxu0 0.0
  %750 = vmatpush.msra.mxu0 0.0
  %751 = vmatpush.msra.mxu0 0.0
  %752 = vmatpush.msra.mxu0 0.0
  %753 = vmatpush.msra.mxu0 0.0
  %754 = vmatpush.msra.mxu0 0.0
  %755 = vmatpush.msra.mxu0 0.0
  %756 = vmatpush.msra.mxu0 0.0
  %757 = vmatpush.msra.mxu0 %v736
  %758 = vmatmul.f32.gmra.mxu0 %v740
  %v759 = vpop.f32.mrf.mxu0
  %v760 = vadd.f32 0.0, %v759
  %761 = vdwg.mxu0
  %763 = vset.pattern.permute.xlu0 0
  %764 = vperm.xlu0 %763, %v24
  %v765 = vpop.permute.xlu0 %764
  %v767 = vadd.f32 %v765, %v760
  %s768 = scalar_lea.vmem %s2, 4
  %v769 = vld [vmem:[%s768] sm:$0xf]
  %771 = vrot.lane.b32.xlu0 %v736, 127
  %v772 = vpop.permute.xlu0 %771
  %v775 = vsel %vm738, %v769, 0
  %777 = vmatpush.msra.mxu0 0.0
  %778 = vmatpush.msra.mxu0 0.0
  %779 = vmatpush.msra.mxu0 0.0
  %780 = vmatpush.msra.mxu0 0.0
  %781 = vmatpush.msra.mxu0 0.0
  %782 = vmatpush.msra.mxu0 0.0
  %783 = vmatpush.msra.mxu0 0.0
  %784 = vmatpush.msra.mxu0 0.0
  %785 = vmatpush.msra.mxu0 0.0
  %786 = vmatpush.msra.mxu0 0.0
  %787 = vmatpush.msra.mxu0 0.0
  %788 = vmatpush.msra.mxu0 0.0
  %789 = vmatpush.msra.mxu0 0.0
  %790 = vmatpush.msra.mxu0 0.0
  %791 = vmatpush.msra.mxu0 0.0
  %792 = vmatpush.msra.mxu0 %v772
  %793 = vmatmul.f32.gmra.mxu0 %v775
  %v794 = vpop.f32.mrf.mxu0
  %v795 = vadd.f32 0.0, %v794
  %796 = vdwg.mxu0
  %v797 = vadd.f32 %v767, %v795
  %s798 = scalar_lea.vmem %s2, 8
  %v799 = vld [vmem:[%s798] sm:$0xf]
  %800 = vrot.lane.b32.xlu0 %v736, 126
  %v801 = vpop.permute.xlu0 %800
  %v804 = vsel %vm738, %v799, 0
  %806 = vmatpush.msra.mxu0 0.0
  %807 = vmatpush.msra.mxu0 0.0
  %808 = vmatpush.msra.mxu0 0.0
  %809 = vmatpush.msra.mxu0 0.0
  %810 = vmatpush.msra.mxu0 0.0
  %811 = vmatpush.msra.mxu0 0.0
  %812 = vmatpush.msra.mxu0 0.0
  %813 = vmatpush.msra.mxu0 0.0
  %814 = vmatpush.msra.mxu0 0.0
  %815 = vmatpush.msra.mxu0 0.0
  %816 = vmatpush.msra.mxu0 0.0
  %817 = vmatpush.msra.mxu0 0.0
  %818 = vmatpush.msra.mxu0 0.0
  %819 = vmatpush.msra.mxu0 0.0
  %820 = vmatpush.msra.mxu0 0.0
  %821 = vmatpush.msra.mxu0 %v801
  %822 = vmatmul.f32.gmra.mxu0 %v804
  %v823 = vpop.f32.mrf.mxu0
  %v824 = vadd.f32 0.0, %v823
  %825 = vdwg.mxu0
  %v826 = vadd.f32 %v797, %v824
  %s827 = scalar_lea.vmem %s2, 12
  %v828 = vld [vmem:[%s827] sm:$0xf]
  %829 = vrot.lane.b32.xlu0 %v736, 122
  %v830 = vpop.permute.xlu0 %829
  %v833 = vsel %vm738, %v828, 0
  %835 = vmatpush.msra.mxu0 0.0
  %836 = vmatpush.msra.mxu0 0.0
  %837 = vmatpush.msra.mxu0 0.0
  %838 = vmatpush.msra.mxu0 0.0
  %839 = vmatpush.msra.mxu0 0.0
  %840 = vmatpush.msra.mxu0 0.0
  %841 = vmatpush.msra.mxu0 0.0
  %842 = vmatpush.msra.mxu0 0.0
  %843 = vmatpush.msra.mxu0 0.0
  %844 = vmatpush.msra.mxu0 0.0
  %845 = vmatpush.msra.mxu0 0.0
  %846 = vmatpush.msra.mxu0 0.0
  %847 = vmatpush.msra.mxu0 0.0
  %848 = vmatpush.msra.mxu0 0.0
  %849 = vmatpush.msra.mxu0 0.0
  %850 = vmatpush.msra.mxu0 %v830
  %851 = vmatmul.f32.gmra.mxu0 %v833
  %v852 = vpop.f32.mrf.mxu0
  %v853 = vadd.f32 0.0, %v852
  %854 = vdwg.mxu0
  %v855 = vadd.f32 %v826, %v853
  %s856 = scalar_lea.vmem %s2, 16
  %v857 = vld [vmem:[%s856] sm:$0xf]
  %858 = vrot.lane.b32.xlu0 %v736, 121
  %v859 = vpop.permute.xlu0 %858
  %v862 = vsel %vm738, %v857, 0
  %864 = vmatpush.msra.mxu0 0.0
  %865 = vmatpush.msra.mxu0 0.0
  %866 = vmatpush.msra.mxu0 0.0
  %867 = vmatpush.msra.mxu0 0.0
  %868 = vmatpush.msra.mxu0 0.0
  %869 = vmatpush.msra.mxu0 0.0
  %870 = vmatpush.msra.mxu0 0.0
  %871 = vmatpush.msra.mxu0 0.0
  %872 = vmatpush.msra.mxu0 0.0
  %873 = vmatpush.msra.mxu0 0.0
  %874 = vmatpush.msra.mxu0 0.0
  %875 = vmatpush.msra.mxu0 0.0
  %876 = vmatpush.msra.mxu0 0.0
  %877 = vmatpush.msra.mxu0 0.0
  %878 = vmatpush.msra.mxu0 0.0
  %879 = vmatpush.msra.mxu0 %v859
  %880 = vmatmul.f32.gmra.mxu0 %v862
  %v881 = vpop.f32.mrf.mxu0
  %v882 = vadd.f32 0.0, %v881
  %883 = vdwg.mxu0
  %v884 = vadd.f32 %v855, %v882
  %s885 = scalar_lea.vmem %s2, 20
  %v886 = vld [vmem:[%s885] sm:$0xf]
  %887 = vrot.lane.b32.xlu0 %v736, 120
  %v888 = vpop.permute.xlu0 %887
  %v891 = vsel %vm738, %v886, 0
  %893 = vmatpush.msra.mxu0 0.0
  %894 = vmatpush.msra.mxu0 0.0
  %895 = vmatpush.msra.mxu0 0.0
  %896 = vmatpush.msra.mxu0 0.0
  %897 = vmatpush.msra.mxu0 0.0
  %898 = vmatpush.msra.mxu0 0.0
  %899 = vmatpush.msra.mxu0 0.0
  %900 = vmatpush.msra.mxu0 0.0
  %901 = vmatpush.msra.mxu0 0.0
  %902 = vmatpush.msra.mxu0 0.0
  %903 = vmatpush.msra.mxu0 0.0
  %904 = vmatpush.msra.mxu0 0.0
  %905 = vmatpush.msra.mxu0 0.0
  %906 = vmatpush.msra.mxu0 0.0
  %907 = vmatpush.msra.mxu0 0.0
  %908 = vmatpush.msra.mxu0 %v888
  %909 = vmatmul.f32.gmra.mxu0 %v891
  %v910 = vpop.f32.mrf.mxu0
  %v911 = vadd.f32 0.0, %v910
  %912 = vdwg.mxu0
  %v913 = vadd.f32 %v884, %v911
  %s914 = scalar_lea.vmem %s2, 24
  %v915 = vld [vmem:[%s914] sm:$0xf]
  %916 = vrot.lane.b32.xlu0 %v736, 116
  %v917 = vpop.permute.xlu0 %916
  %v920 = vsel %vm738, %v915, 0
  %922 = vmatpush.msra.mxu0 0.0
  %923 = vmatpush.msra.mxu0 0.0
  %924 = vmatpush.msra.mxu0 0.0
  %925 = vmatpush.msra.mxu0 0.0
  %926 = vmatpush.msra.mxu0 0.0
  %927 = vmatpush.msra.mxu0 0.0
  %928 = vmatpush.msra.mxu0 0.0
  %929 = vmatpush.msra.mxu0 0.0
  %930 = vmatpush.msra.mxu0 0.0
  %931 = vmatpush.msra.mxu0 0.0
  %932 = vmatpush.msra.mxu0 0.0
  %933 = vmatpush.msra.mxu0 0.0
  %934 = vmatpush.msra.mxu0 0.0
  %935 = vmatpush.msra.mxu0 0.0
  %936 = vmatpush.msra.mxu0 0.0
  %937 = vmatpush.msra.mxu0 %v917
  %938 = vmatmul.f32.gmra.mxu0 %v920
  %v939 = vpop.f32.mrf.mxu0
  %v940 = vadd.f32 0.0, %v939
  %941 = vdwg.mxu0
  %v942 = vadd.f32 %v913, %v940
  %s943 = scalar_lea.vmem %s2, 28
  %v944 = vld [vmem:[%s943] sm:$0xf]
  %945 = vrot.lane.b32.xlu0 %v736, 115
  %v946 = vpop.permute.xlu0 %945
  %v949 = vsel %vm738, %v944, 0
  %951 = vmatpush.msra.mxu0 0.0
  %952 = vmatpush.msra.mxu0 0.0
  %953 = vmatpush.msra.mxu0 0.0
  %954 = vmatpush.msra.mxu0 0.0
  %955 = vmatpush.msra.mxu0 0.0
  %956 = vmatpush.msra.mxu0 0.0
  %957 = vmatpush.msra.mxu0 0.0
  %958 = vmatpush.msra.mxu0 0.0
  %959 = vmatpush.msra.mxu0 0.0
  %960 = vmatpush.msra.mxu0 0.0
  %961 = vmatpush.msra.mxu0 0.0
  %962 = vmatpush.msra.mxu0 0.0
  %963 = vmatpush.msra.mxu0 0.0
  %964 = vmatpush.msra.mxu0 0.0
  %965 = vmatpush.msra.mxu0 0.0
  %966 = vmatpush.msra.mxu0 %v946
  %967 = vmatmul.f32.gmra.mxu0 %v949
  %v968 = vpop.f32.mrf.mxu0
  %v969 = vadd.f32 0.0, %v968
  %970 = vdwg.mxu0
  %v971 = vadd.f32 %v942, %v969
  %s972 = scalar_lea.vmem %s2, 32
  %v973 = vld [vmem:[%s972] sm:$0xf]
  %974 = vrot.lane.b32.xlu0 %v736, 114
  %v975 = vpop.permute.xlu0 %974
  %v978 = vsel %vm738, %v973, 0
  %980 = vmatpush.msra.mxu0 0.0
  %981 = vmatpush.msra.mxu0 0.0
  %982 = vmatpush.msra.mxu0 0.0
  %983 = vmatpush.msra.mxu0 0.0
  %984 = vmatpush.msra.mxu0 0.0
  %985 = vmatpush.msra.mxu0 0.0
  %986 = vmatpush.msra.mxu0 0.0
  %987 = vmatpush.msra.mxu0 0.0
  %988 = vmatpush.msra.mxu0 0.0
  %989 = vmatpush.msra.mxu0 0.0
  %990 = vmatpush.msra.mxu0 0.0
  %991 = vmatpush.msra.mxu0 0.0
  %992 = vmatpush.msra.mxu0 0.0
  %993 = vmatpush.msra.mxu0 0.0
  %994 = vmatpush.msra.mxu0 0.0
  %995 = vmatpush.msra.mxu0 %v975
  %996 = vmatmul.f32.gmra.mxu0 %v978
  %v997 = vpop.f32.mrf.mxu0
  %v998 = vadd.f32 0.0, %v997
  %999 = vdwg.mxu0
  %v1000 = vadd.f32 %v971, %v998
  %1002 = vrot.lane.b32.xlu0 %v1000, 127
  %v1003 = vpop.permute.xlu0 %1002
  %v1005 = vmax.f32 %v1000, %v1003
  %1006 = vrot.lane.b32.xlu0 %v1000, 122
  %v1007 = vpop.permute.xlu0 %1006
  %v1009 = vmax.f32 %v1005, %v1007
  %1010 = vrot.lane.b32.xlu0 %v1000, 121
  %v1011 = vpop.permute.xlu0 %1010
  %v1013 = vmax.f32 %v1009, %v1011
  %v1014 = vld [vmem:[%s5] sm:$0xff]
  %v1015 = vld [vmem:[%s5 + $0x8] sm:$0xff]
  %v1016 = vld [vmem:[%s5 + $0x10] sm:$0xff]
  %v1017 = vld [vmem:[%s5 + $0x18] sm:$0xff]
  %v1018 = vld [vmem:[%s5 + $0x20] sm:$0xff]
  %v1019 = vld [vmem:[%s5 + $0x28] sm:$0xff]
  %v1020 = vld [vmem:[%s5 + $0x30] sm:$0x7]
  %vm1021 = vcmask 416768
  %v1023 = vsel %vm1021, %v1013, 0
  %vm1025 = vcmask 1042432
  %v1027 = vsel %vm1025, %v1020, 0
  %1029 = vmatpush.msra.mxu0 0.0
  %1030 = vmatpush.msra.mxu0 0.0
  %1031 = vmatpush.msra.mxu0 0.0
  %1032 = vmatpush.msra.mxu0 0.0
  %1033 = vmatpush.msra.mxu0 0.0
  %1034 = vmatpush.msra.mxu0 0.0
  %1035 = vmatpush.msra.mxu0 0.0
  %1036 = vmatpush.msra.mxu0 0.0
  %1037 = vmatpush.msra.mxu0 0.0
  %1038 = vmatpush.msra.mxu0 %v1027
  %1039 = vmatpush.msra.mxu0 %v1019
  %1040 = vmatpush.msra.mxu0 %v1018
  %1041 = vmatpush.msra.mxu0 %v1017
  %1042 = vmatpush.msra.mxu0 %v1016
  %1043 = vmatpush.msra.mxu0 %v1015
  %1044 = vmatpush.msra.mxu0 %v1014
  %1045 = vmatmul.f32.gmra.mxu0 %v1023
  %v1046 = vpop.f32.mrf.mxu0
  %v1047 = vadd.f32 0.0, %v1046
  %1048 = vdwg.mxu0
  %vm1049 = vcmp.gt.f32.partialorder %v1047, 0.0
  %v1050 = vstv %s28
  %v1051 = vmul.f32 %v1050, %v1047
  %v1052 = vsel %vm1049, %v1047, %v1051
  %v1053 = vadd.f32 %v1052, 1.0
  %1054 = vset.pattern.permute.xlu0 43
  %1055 = vperm.xlu0 %1054, %v30
  %v1056 = vpop.permute.xlu0 %1055
  %v1058 = vmul.f32 %v1056, %v1053
  %vm1059 = vcmask 27648
  %1060 = vst.msk [vmem:[%s6] sm:$0xf] %vm1059, %v1058
  %1061 = vset.pattern.permute.xlu0 75
  %1062 = vperm.xlu0 %1061, %v32
  %v1063 = vpop.permute.xlu0 %1062
  %v1065 = vmul.f32 %v1063, %v1053
  %1067 = vrot.lane.b32.xlu0 %v1065, 124
  %v1068 = vpop.permute.xlu0 %1067
  %s1070 = scalar_lea.vmem %s6, 4
  %1071 = vst.msk [vmem:[%s1070] sm:$0xf] %vm1059, %v1068
  // Predicated region
  $region26: #{spatial_attention_forward.1} parent=0 // pred_check
    _
  $region27: #{spatial_attention_forward.1} parent=0 // pred_check_branch
    %1073 = sbr.rel (0) target = $region29
  $region28: #{spatial_attention_forward.1} parent=0 // pred_region
    _
  $region29: #{spatial_attention_forward.1} parent=0 // pred_fallthru
    _
  // Predicated region
  $region30: #{spatial_attention_forward.1} parent=0 // pred_check
    _
  $region31: #{spatial_attention_forward.1} parent=0 // pred_check_branch
    %1075 = sbr.rel (0) target = $region33
  $region32: #{spatial_attention_forward.1} parent=0 // pred_region
    _
  $region33: #{spatial_attention_forward.1} parent=0 // pred_fallthru
    _

</llo_original>
